<compile_context>
chip_gen: v5e
topology: v5e:2x2
jax: 0.10.0
libtpu: 0.0.40
codegen_flags: <defaults>
</compile_context>

<pallas_src>
import functools

import jax
import jax.numpy as jnp
from jax.experimental import pallas as pl
from jax.experimental.pallas import tpu as pltpu

# Module / problem sizes.
NUM_INPUTS = 64
NUM_OUTPUTS = 16
NUM_HIDDENS1 = 32
NUM_HIDDENS2 = 32

# The reference code uses undefined globals `dropout1` / `dropout2`; pick
# deterministic values here.
DROPOUT1 = 0.2
DROPOUT2 = 0.5

# Default batch tile (rows per grid step). Small enough for v7x's 64 MiB VMEM
# (per-step footprint ~< 1 MiB double-buffered), big enough to amortize the
# ~0.35 us per-step overhead.
DEFAULT_TILE_B = 512


def _round_up(n, m):
    return ((n + m - 1) // m) * m


def _apply_dropout_mask(h, mask, p):
    """Mirrors the reference `dropout(X, p)`, including its quirks:
       p == 1 -> passthrough, p == 0 -> zeros, otherwise mask * h / (1 - p),
       where mask was built host-side as (randn(shape) > p).float()."""
    assert 0 <= p <= 1
    if p == 1:
        return h
    if p == 0:
        return jnp.zeros_like(h)
    return mask * h * (1.0 / (1.0 - p))


def mlp_dropout_kernel(x_ref, m1_ref, m2_ref,
                       w1_ref, b1_ref, w2_ref, b2_ref, w3_ref, b3_ref,
                       out_ref, *, training):
    x = x_ref[...]

    # lin1 + ReLU  (bf16 operands on the MXU, f32 accumulate)
    h1 = jnp.dot(x.astype(jnp.bfloat16), w1_ref[...],
                 preferred_element_type=jnp.float32) + b1_ref[...]
    h1 = jnp.maximum(h1, 0.0)
    if training:
        h1 = _apply_dropout_mask(h1, m1_ref[...], DROPOUT1)

    # lin2 + ReLU
    h2 = jnp.dot(h1.astype(jnp.bfloat16), w2_ref[...],
                 preferred_element_type=jnp.float32) + b2_ref[...]
    h2 = jnp.maximum(h2, 0.0)
    if training:
        h2 = _apply_dropout_mask(h2, m2_ref[...], DROPOUT2)

    # lin3 (no activation)
    out = jnp.dot(h2.astype(jnp.bfloat16), w3_ref[...],
                  preferred_element_type=jnp.float32) + b3_ref[...]
    out_ref[...] = out.astype(out_ref.dtype)


def net_forward(x, params, dropout_key, *, training=True, tile_b=DEFAULT_TILE_B):
    """JAX wrapper: flatten, pad to a multiple of the batch tile, run the fused
       Pallas kernel over a 1-D batch grid, and slice back to the true batch."""
    x2d = x.reshape(-1, NUM_INPUTS).astype(jnp.float32)
    batch = x2d.shape[0]

    # Tile size: multiple of 8 sublanes, never larger than the padded batch.
    tile_b = min(tile_b, _round_up(batch, 8))
    tile_b = _round_up(tile_b, 8)
    padded = _round_up(batch, tile_b)
    if padded != batch:
        x2d = jnp.pad(x2d, ((0, padded - batch), (0, 0)))

    # Host-side dropout masks, one independent Bernoulli-ish mask per row
    # (mask = (randn > p), matching the reference's statistics).
    k1, k2 = jax.random.split(dropout_key)
    if training:
        m1 = (jax.random.normal(k1, (padded, NUM_HIDDENS1)) > DROPOUT1
              ).astype(jnp.float32)
        m2 = (jax.random.normal(k2, (padded, NUM_HIDDENS2)) > DROPOUT2
              ).astype(jnp.float32)
    else:
        m1 = jnp.ones((padded, NUM_HIDDENS1), jnp.float32)
        m2 = jnp.ones((padded, NUM_HIDDENS2), jnp.float32)

    # bf16 weights for the MXU; biases stay f32 (added to the f32 accumulator).
    w1 = params["w1"].astype(jnp.bfloat16)
    w2 = params["w2"].astype(jnp.bfloat16)
    w3 = params["w3"].astype(jnp.bfloat16)
    b1, b2, b3 = params["b1"], params["b2"], params["b3"]

    grid = (padded // tile_b,)
    kernel = functools.partial(mlp_dropout_kernel, training=training)

    flops = 2 * padded * (NUM_INPUTS * NUM_HIDDENS1
                          + NUM_HIDDENS1 * NUM_HIDDENS2
                          + NUM_HIDDENS2 * NUM_OUTPUTS)
    bytes_accessed = (
        padded * (NUM_INPUTS + NUM_HIDDENS1 + NUM_HIDDENS2 + NUM_OUTPUTS) * 4
        + (NUM_INPUTS * NUM_HIDDENS1 + NUM_HIDDENS1 * NUM_HIDDENS2
           + NUM_HIDDENS2 * NUM_OUTPUTS) * 2
        + (NUM_HIDDENS1 + NUM_HIDDENS2 + NUM_OUTPUTS) * 4)

    out = pl.pallas_call(
        kernel,
        out_shape=jax.ShapeDtypeStruct((padded, NUM_OUTPUTS), jnp.float32),
        grid=grid,
        in_specs=[
            # Batch-tiled activations and dropout masks.
            pl.BlockSpec((tile_b, NUM_INPUTS), lambda i: (i, 0)),
            pl.BlockSpec((tile_b, NUM_HIDDENS1), lambda i: (i, 0)),
            pl.BlockSpec((tile_b, NUM_HIDDENS2), lambda i: (i, 0)),
            # Weights / biases: constant index_map -> VMEM-resident across steps.
            pl.BlockSpec((NUM_INPUTS, NUM_HIDDENS1), lambda i: (0, 0)),
            pl.BlockSpec((1, NUM_HIDDENS1), lambda i: (0, 0)),
            pl.BlockSpec((NUM_HIDDENS1, NUM_HIDDENS2), lambda i: (0, 0)),
            pl.BlockSpec((1, NUM_HIDDENS2), lambda i: (0, 0)),
            pl.BlockSpec((NUM_HIDDENS2, NUM_OUTPUTS), lambda i: (0, 0)),
            pl.BlockSpec((1, NUM_OUTPUTS), lambda i: (0, 0)),
        ],
        out_specs=pl.BlockSpec((tile_b, NUM_OUTPUTS), lambda i: (i, 0)),
        compiler_params=pltpu.CompilerParams(
            dimension_semantics=("parallel",)),
        cost_estimate=pl.CostEstimate(
            flops=flops, transcendentals=0, bytes_accessed=bytes_accessed),
    )(x2d, m1, m2, w1, b1, w2, b2, w3, b3)

    if padded != batch:
        out = out[:batch]
    return out


def init_params(key):
    """Deterministic synthetic parameters. nn.Linear stores weight as (out, in)
       and computes x @ W.T + b; we pre-transpose to (in, out) so the kernel
       does x @ W + b with identical math."""
    ks = jax.random.split(key, 6)
    w1 = jax.random.normal(ks[0], (NUM_INPUTS, NUM_HIDDENS1), jnp.float32) * 0.05
    b1 = jax.random.normal(ks[1], (1, NUM_HIDDENS1), jnp.float32) * 0.05
    w2 = jax.random.normal(ks[2], (NUM_HIDDENS1, NUM_HIDDENS2), jnp.float32) * 0.05
    b2 = jax.random.normal(ks[3], (1, NUM_HIDDENS2), jnp.float32) * 0.05
    w3 = jax.random.normal(ks[4], (NUM_HIDDENS2, NUM_OUTPUTS), jnp.float32) * 0.05
    b3 = jax.random.normal(ks[5], (1, NUM_OUTPUTS), jnp.float32) * 0.05
    return dict(w1=w1, b1=b1, w2=w2, b2=b2, w3=w3, b3=b3)


if __name__ == "__main__":
    key = jax.random.PRNGKey(0)
    pkey, xkey, dkey = jax.random.split(key, 3)

    params = init_params(pkey)

    # Example input: any leading shape works; forward flattens to (-1, 64).
    x = jax.random.normal(xkey, (2, 4, NUM_INPUTS), jnp.float32)  # -> (8, 64) rows

    out = net_forward(x, params, dkey, training=True)   # istraining==True path
    jax.block_until_ready(out)

    assert out.shape == (8, NUM_OUTPUTS)
    assert out.dtype == jnp.float32
    assert bool(jnp.all(jnp.isfinite(out)))
    print("KERNEL_OK")
</pallas_src>

<mosaic_0001>
module attributes {stable_mosaic.version = 11 : i64} {
  func.func @mlp_dropout_kernel(%arg0: i32, %arg1: memref<8x64xf32, #tpu.memory_space<vmem>>, %arg2: memref<8x32xf32, #tpu.memory_space<vmem>>, %arg3: memref<8x32xf32, #tpu.memory_space<vmem>>, %arg4: memref<64x32xbf16, #tpu.memory_space<vmem>>, %arg5: memref<1x32xf32, #tpu.memory_space<vmem>>, %arg6: memref<32x32xbf16, #tpu.memory_space<vmem>>, %arg7: memref<1x32xf32, #tpu.memory_space<vmem>>, %arg8: memref<32x16xbf16, #tpu.memory_space<vmem>>, %arg9: memref<1x16xf32, #tpu.memory_space<vmem>>, %arg10: memref<8x16xf32, #tpu.memory_space<vmem>>) attributes {dimension_semantics = [#tpu.dimension_semantics<parallel>], iteration_bounds = array<i64: 1>, scalar_prefetch = 0 : i64, scratch_operands = 0 : i64, tpu.core_type = #tpu.core_type<tc>, window_params = [{transform_indices = @transform_0, window_bounds = array<i64: 8, 64>}, {transform_indices = @transform_1, window_bounds = array<i64: 8, 32>}, {transform_indices = @transform_2, window_bounds = array<i64: 8, 32>}, {pipeline_mode = #tpu.pipeline_mode<synchronous>, transform_indices = @transform_3, window_bounds = array<i64: 64, 32>}, {pipeline_mode = #tpu.pipeline_mode<synchronous>, transform_indices = @transform_4, window_bounds = array<i64: 1, 32>}, {pipeline_mode = #tpu.pipeline_mode<synchronous>, transform_indices = @transform_5, window_bounds = array<i64: 32, 32>}, {pipeline_mode = #tpu.pipeline_mode<synchronous>, transform_indices = @transform_6, window_bounds = array<i64: 1, 32>}, {pipeline_mode = #tpu.pipeline_mode<synchronous>, transform_indices = @transform_7, window_bounds = array<i64: 32, 16>}, {pipeline_mode = #tpu.pipeline_mode<synchronous>, transform_indices = @transform_8, window_bounds = array<i64: 1, 16>}, {transform_indices = @transform_9, window_bounds = array<i64: 8, 16>}]} {
    %c0 = arith.constant 0 : index
    %c0_0 = arith.constant 0 : index
    %0 = vector.load %arg1[%c0, %c0_0] : memref<8x64xf32, #tpu.memory_space<vmem>>, vector<8x64xf32>
    %1 = arith.truncf %0 : vector<8x64xf32> to vector<8x64xbf16>
    %c0_1 = arith.constant 0 : index
    %c0_2 = arith.constant 0 : index
    %2 = vector.load %arg4[%c0_1, %c0_2] : memref<64x32xbf16, #tpu.memory_space<vmem>>, vector<64x32xbf16>
    %cst = arith.constant dense<0.000000e+00> : vector<8x32xf32>
    %3 = tpu.matmul %1, %2, %cst {dimension_numbers = #tpu.dot_dimension_numbers<[1], [0], [0], [1], [0, 0, 1, 1], [], []>} : vector<8x64xbf16>, vector<64x32xbf16>, vector<8x32xf32> -> vector<8x32xf32>
    %c0_3 = arith.constant 0 : index
    %c0_4 = arith.constant 0 : index
    %4 = vector.load %arg5[%c0_3, %c0_4] : memref<1x32xf32, #tpu.memory_space<vmem>>, vector<1x32xf32>
    %5 = vector.broadcast %4 : vector<1x32xf32> to vector<8x32xf32>
    %6 = arith.addf %3, %5 : vector<8x32xf32>
    %cst_5 = arith.constant 0.000000e+00 : f32
    %7 = vector.broadcast %cst_5 : f32 to vector<8x32xf32>
    %8 = arith.maximumf %6, %7 : vector<8x32xf32>
    %c0_6 = arith.constant 0 : index
    %c0_7 = arith.constant 0 : index
    %9 = vector.load %arg2[%c0_6, %c0_7] : memref<8x32xf32, #tpu.memory_space<vmem>>, vector<8x32xf32>
    %10 = arith.mulf %9, %8 : vector<8x32xf32>
    %cst_8 = arith.constant 1.250000e+00 : f32
    %11 = vector.broadcast %cst_8 : f32 to vector<8x32xf32>
    %12 = arith.mulf %10, %11 : vector<8x32xf32>
    %13 = arith.truncf %12 : vector<8x32xf32> to vector<8x32xbf16>
    %c0_9 = arith.constant 0 : index
    %c0_10 = arith.constant 0 : index
    %14 = vector.load %arg6[%c0_9, %c0_10] : memref<32x32xbf16, #tpu.memory_space<vmem>>, vector<32x32xbf16>
    %cst_11 = arith.constant dense<0.000000e+00> : vector<8x32xf32>
    %15 = tpu.matmul %13, %14, %cst_11 {dimension_numbers = #tpu.dot_dimension_numbers<[1], [0], [0], [1], [0, 0, 1, 1], [], []>} : vector<8x32xbf16>, vector<32x32xbf16>, vector<8x32xf32> -> vector<8x32xf32>
    %c0_12 = arith.constant 0 : index
    %c0_13 = arith.constant 0 : index
    %16 = vector.load %arg7[%c0_12, %c0_13] : memref<1x32xf32, #tpu.memory_space<vmem>>, vector<1x32xf32>
    %17 = vector.broadcast %16 : vector<1x32xf32> to vector<8x32xf32>
    %18 = arith.addf %15, %17 : vector<8x32xf32>
    %cst_14 = arith.constant 0.000000e+00 : f32
    %19 = vector.broadcast %cst_14 : f32 to vector<8x32xf32>
    %20 = arith.maximumf %18, %19 : vector<8x32xf32>
    %c0_15 = arith.constant 0 : index
    %c0_16 = arith.constant 0 : index
    %21 = vector.load %arg3[%c0_15, %c0_16] : memref<8x32xf32, #tpu.memory_space<vmem>>, vector<8x32xf32>
    %22 = arith.mulf %21, %20 : vector<8x32xf32>
    %cst_17 = arith.constant 2.000000e+00 : f32
    %23 = vector.broadcast %cst_17 : f32 to vector<8x32xf32>
    %24 = arith.mulf %22, %23 : vector<8x32xf32>
    %25 = arith.truncf %24 : vector<8x32xf32> to vector<8x32xbf16>
    %c0_18 = arith.constant 0 : index
    %c0_19 = arith.constant 0 : index
    %26 = vector.load %arg8[%c0_18, %c0_19] : memref<32x16xbf16, #tpu.memory_space<vmem>>, vector<32x16xbf16>
    %cst_20 = arith.constant dense<0.000000e+00> : vector<8x16xf32>
    %27 = tpu.matmul %25, %26, %cst_20 {dimension_numbers = #tpu.dot_dimension_numbers<[1], [0], [0], [1], [0, 0, 1, 1], [], []>} : vector<8x32xbf16>, vector<32x16xbf16>, vector<8x16xf32> -> vector<8x16xf32>
    %c0_21 = arith.constant 0 : index
    %c0_22 = arith.constant 0 : index
    %28 = vector.load %arg9[%c0_21, %c0_22] : memref<1x16xf32, #tpu.memory_space<vmem>>, vector<1x16xf32>
    %29 = vector.broadcast %28 : vector<1x16xf32> to vector<8x16xf32>
    %30 = arith.addf %27, %29 : vector<8x16xf32>
    %c0_23 = arith.constant 0 : index
    %c0_24 = arith.constant 0 : index
    %31 = vector.load %arg10[%c0_23, %c0_24] : memref<8x16xf32, #tpu.memory_space<vmem>>, vector<8x16xf32>
    tpu.vector_store %arg10[%c0_23, %c0_24], %30 {strides = array<i32>} : memref<8x16xf32, #tpu.memory_space<vmem>>, vector<8x16xf32>,
    return
  }
  func.func @transform_0(%arg0: i32) -> (i32, i32) {
    %c0_i32 = arith.constant 0 : i32
    %c0_i32_0 = arith.constant 0 : i32
    return %arg0, %c0_i32 : i32, i32
  }
  func.func @transform_1(%arg0: i32) -> (i32, i32) {
    %c0_i32 = arith.constant 0 : i32
    %c0_i32_0 = arith.constant 0 : i32
    return %arg0, %c0_i32 : i32, i32
  }
  func.func @transform_2(%arg0: i32) -> (i32, i32) {
    %c0_i32 = arith.constant 0 : i32
    %c0_i32_0 = arith.constant 0 : i32
    return %arg0, %c0_i32 : i32, i32
  }
  func.func @transform_3(%arg0: i32) -> (i32, i32) {
    %c0_i32 = arith.constant 0 : i32
    %c0_i32_0 = arith.constant 0 : i32
    %c0_i32_1 = arith.constant 0 : i32
    return %c0_i32, %c0_i32_0 : i32, i32
  }
  func.func @transform_4(%arg0: i32) -> (i32, i32) {
    %c0_i32 = arith.constant 0 : i32
    %c0_i32_0 = arith.constant 0 : i32
    %c0_i32_1 = arith.constant 0 : i32
    return %c0_i32, %c0_i32_0 : i32, i32
  }
  func.func @transform_5(%arg0: i32) -> (i32, i32) {
    %c0_i32 = arith.constant 0 : i32
    %c0_i32_0 = arith.constant 0 : i32
    %c0_i32_1 = arith.constant 0 : i32
    return %c0_i32, %c0_i32_0 : i32, i32
  }
  func.func @transform_6(%arg0: i32) -> (i32, i32) {
    %c0_i32 = arith.constant 0 : i32
    %c0_i32_0 = arith.constant 0 : i32
    %c0_i32_1 = arith.constant 0 : i32
    return %c0_i32, %c0_i32_0 : i32, i32
  }
  func.func @transform_7(%arg0: i32) -> (i32, i32) {
    %c0_i32 = arith.constant 0 : i32
    %c0_i32_0 = arith.constant 0 : i32
    %c0_i32_1 = arith.constant 0 : i32
    return %c0_i32, %c0_i32_0 : i32, i32
  }
  func.func @transform_8(%arg0: i32) -> (i32, i32) {
    %c0_i32 = arith.constant 0 : i32
    %c0_i32_0 = arith.constant 0 : i32
    %c0_i32_1 = arith.constant 0 : i32
    return %c0_i32, %c0_i32_0 : i32, i32
  }
  func.func @transform_9(%arg0: i32) -> (i32, i32) {
    %c0_i32 = arith.constant 0 : i32
    %c0_i32_0 = arith.constant 0 : i32
    return %arg0, %c0_i32 : i32, i32
  }
}

</mosaic_0001>

<llo_original>
// kernel: tpu_custom_call.1
$region0: #{tpu_custom_call.1}
  #allocation0 [shape = 'u32[]', space=smem, size = 0x4, offset = 0x4, fixed_abs, tag = 'smem constant byte address 0x4 - core index']
  #allocation1 [shape = 'u32[72,128]{1,0:T(1,128)}', space=vmem, size = 0x9000, scoped, tag = 'internal scratch']
  %s0 = inlined_call_operand.vmem [shape: f32[8,64], index: 0, kind: input, shape index: {}]
  %s1 = inlined_call_operand.vmem [shape: f32[8,32], index: 1, kind: input, shape index: {}]
  %s2 = inlined_call_operand.vmem [shape: f32[8,32], index: 2, kind: input, shape index: {}]
  %s3 = inlined_call_operand.vmem [shape: bf16[64,32], index: 3, kind: input, shape index: {}]
  %s4 = inlined_call_operand.vmem [shape: f32[1,32], index: 4, kind: input, shape index: {}]
  %s5 = inlined_call_operand.vmem [shape: bf16[32,32], index: 5, kind: input, shape index: {}]
  %s6 = inlined_call_operand.vmem [shape: f32[1,32], index: 6, kind: input, shape index: {}]
  %s7 = inlined_call_operand.vmem [shape: bf16[32,16], index: 7, kind: input, shape index: {}]
  %s8 = inlined_call_operand.vmem [shape: f32[1,16], index: 8, kind: input, shape index: {}]
  %s9 = inlined_call_operand.hbm [shape: f32[8,16], index: 9, kind: output, shape index: {}]
  %s10 = sld [smem:[#allocation0]]
  $region46: #{tpu_custom_call.1} parent=0
    _
  %s12 = ssub.s32 1, %s10
  %s13 = scalar_select 0, %s12, %s10
  $region1: #{tpu_custom_call.1} parent=0
    #allocation2 [shape = 'u8[4096]{0}', space=vmem, size = 0x1000, scoped, tag = 'output window, operand 0, single buffered']
    #allocation3 [shape = 's32[1]{0}', space=sflag, size = 0x4, scoped, tag = 'scoped memory for tpu_custom_call.1']
    %14 = vsyncpa [#allocation3], 0
    // Predicated region
    $region2: #{tpu_custom_call.1} parent=1 // pred_check
      _
    $region3: #{tpu_custom_call.1} parent=1 // pred_check_branch
      %16 = sbr.rel (0) target = $region5
    $region4: #{tpu_custom_call.1} parent=1 // pred_region
      _
    $region5: #{tpu_custom_call.1} parent=1 // pred_fallthru
      _
    // Predicated region
    $region6: #{tpu_custom_call.1} parent=1 // pred_check
      _
    $region7: #{tpu_custom_call.1} parent=1 // pred_check_branch
      %18 = sbr.rel (0) target = $region9
    $region8: #{tpu_custom_call.1} parent=1 // pred_region
      _
    $region9: #{tpu_custom_call.1} parent=1 // pred_fallthru
      _
    // Predicated region
    $region10: #{tpu_custom_call.1} parent=1 // pred_check
      _
    $region11: #{tpu_custom_call.1} parent=1 // pred_check_branch
      %20 = sbr.rel (0) target = $region13
    $region12: #{tpu_custom_call.1} parent=1 // pred_region
      _
    $region13: #{tpu_custom_call.1} parent=1 // pred_fallthru
      _
    // Predicated region
    $region14: #{tpu_custom_call.1} parent=1 // pred_check
      _
    $region15: #{tpu_custom_call.1} parent=1 // pred_check_branch
      %22 = sbr.rel (0) target = $region17
    $region16: #{tpu_custom_call.1} parent=1 // pred_region
      _
    $region17: #{tpu_custom_call.1} parent=1 // pred_fallthru
      _
    // Predicated region
    $region18: #{tpu_custom_call.1} parent=1 // pred_check
      _
    $region19: #{tpu_custom_call.1} parent=1 // pred_check_branch
      %24 = sbr.rel (0) target = $region21
    $region20: #{tpu_custom_call.1} parent=1 // pred_region
      _
    $region21: #{tpu_custom_call.1} parent=1 // pred_fallthru
      _
    // Predicated region
    $region22: #{tpu_custom_call.1} parent=1 // pred_check
      _
    $region23: #{tpu_custom_call.1} parent=1 // pred_check_branch
      %26 = sbr.rel (0) target = $region25
    $region24: #{tpu_custom_call.1} parent=1 // pred_region
      _
    $region25: #{tpu_custom_call.1} parent=1 // pred_fallthru
      _
    // Predicated region
    $region26: #{tpu_custom_call.1} parent=1 // pred_check
      _
    $region27: #{tpu_custom_call.1} parent=1 // pred_check_branch
      %28 = sbr.rel (0) target = $region29
    $region28: #{tpu_custom_call.1} parent=1 // pred_region
      _
    $region29: #{tpu_custom_call.1} parent=1 // pred_fallthru
      _
    // Predicated region
    $region30: #{tpu_custom_call.1} parent=1 // pred_check
      _
    $region31: #{tpu_custom_call.1} parent=1 // pred_check_branch
      %30 = sbr.rel (0) target = $region33
    $region32: #{tpu_custom_call.1} parent=1 // pred_region
      _
    $region33: #{tpu_custom_call.1} parent=1 // pred_fallthru
      _
    // Predicated region
    $region34: #{tpu_custom_call.1} parent=1 // pred_check
      _
    $region35: #{tpu_custom_call.1} parent=1 // pred_check_branch
      %32 = sbr.rel (0) target = $region37
    $region36: #{tpu_custom_call.1} parent=1 // pred_region
      _
    $region37: #{tpu_custom_call.1} parent=1 // pred_fallthru
      _
    %v34 = vld [vmem:[%s0] sm:$0xff]
    %v35 = vpack.c.bf16 %v34, %v34
    %v36 = vld [vmem:[%s3] sm:$0xf]
    %v37 = vld [vmem:[%s3 + $0x4] sm:$0xf]
    %v38 = vld [vmem:[%s3 + $0x8] sm:$0xf]
    %v39 = vld [vmem:[%s3 + $0xc] sm:$0xf]
    %v40 = vld [vmem:[%s3 + $0x10] sm:$0xf]
    %v41 = vld [vmem:[%s3 + $0x14] sm:$0xf]
    %v42 = vld [vmem:[%s3 + $0x18] sm:$0xf]
    %v43 = vld [vmem:[%s3 + $0x1c] sm:$0xf]
    %v44 = vld [vmem:[%s4] sm:$0x1]
    %v46 = vperm.slane %v44, 0
    %v56 = vunpack.c.l.b16 %v36
    %v57 = vunpack.c.l.b16 %v37
    %v58 = vunpack.c.l.b16 %v38
    %v59 = vunpack.c.l.b16 %v39
    %v60 = vunpack.c.l.b16 %v40
    %v61 = vunpack.c.l.b16 %v41
    %v62 = vunpack.c.l.b16 %v42
    %v63 = vunpack.c.l.b16 %v43
    %v64 = vpack.c.b16 %v57, %v56
    %v65 = vpack.c.b16 %v59, %v58
    %v66 = vpack.c.b16 %v61, %v60
    %v67 = vpack.c.b16 %v63, %v62
    %vm72 = vcmask 523264
    %v74 = vsel %vm72, %v35, 0
    %76 = vmatpush.bf16.msra.mxu0 0
    %77 = vmatpush.bf16.msra.mxu0 0
    %78 = vmatpush.bf16.msra.mxu0 0
    %79 = vmatpush.bf16.msra.mxu0 0
    %80 = vmatpush.bf16.msra.mxu0 %v67
    %81 = vmatpush.bf16.msra.mxu0 %v66
    %82 = vmatpush.bf16.msra.mxu0 %v65
    %83 = vmatpush.bf16.msra.mxu0 %v64
    %84 = vmatmul.bf16.gmra.mxu0 %v74
    %v85 = vpop.f32.mrf.mxu0
    %v86 = vadd.f32 %v46, %v85
    %v87 = vpop.f32.mrf.mxu0
    %88 = vdwg.mxu0
    %v89 = vmax.f32 %v86, 0.0
    %v90 = vld [vmem:[%s1] sm:$0xff]
    %v91 = vmul.f32 %v90, %v89
    %v92 = vmul.f32 %v91, 1.25
    %v93 = vpack.c.bf16 %v92, %v92
    %v94 = vld [vmem:[%s5] sm:$0xf]
    %v95 = vld [vmem:[%s5 + $0x4] sm:$0xf]
    %v96 = vld [vmem:[%s5 + $0x8] sm:$0xf]
    %v97 = vld [vmem:[%s5 + $0xc] sm:$0xf]
    %v98 = vld [vmem:[%s6] sm:$0x1]
    %v100 = vperm.slane %v98, 0
    %v106 = vunpack.c.l.b16 %v94
    %v107 = vunpack.c.l.b16 %v95
    %v108 = vunpack.c.l.b16 %v96
    %v109 = vunpack.c.l.b16 %v97
    %v110 = vpack.c.b16 %v107, %v106
    %v111 = vpack.c.b16 %v109, %v108
    %vm114 = vcmask 261120
    %v116 = vsel %vm114, %v93, 0
    %118 = vmatpush.bf16.msra.mxu0 0
    %119 = vmatpush.bf16.msra.mxu0 0
    %120 = vmatpush.bf16.msra.mxu0 0
    %121 = vmatpush.bf16.msra.mxu0 0
    %122 = vmatpush.bf16.msra.mxu0 0
    %123 = vmatpush.bf16.msra.mxu0 0
    %124 = vmatpush.bf16.msra.mxu0 %v111
    %125 = vmatpush.bf16.msra.mxu0 %v110
    %126 = vmatmul.bf16.gmra.mxu0 %v116
    %v127 = vpop.f32.mrf.mxu0
    %v128 = vadd.f32 %v100, %v127
    %v129 = vpop.f32.mrf.mxu0
    %130 = vdwg.mxu0
    %v131 = vmax.f32 %v128, 0.0
    %v132 = vld [vmem:[%s2] sm:$0xff]
    %v133 = vmul.f32 %v132, %v131
    %v134 = vmul.f32 %v133, 2.0
    %v135 = vpack.c.bf16 %v134, %v134
    %v136 = vld [vmem:[%s7] sm:$0xf]
    %v137 = vld [vmem:[%s7 + $0x4] sm:$0xf]
    %v138 = vld [vmem:[%s7 + $0x8] sm:$0xf]
    %v139 = vld [vmem:[%s7 + $0xc] sm:$0xf]
    %v140 = vld [vmem:[%s8] sm:$0x1]
    %v142 = vperm.slane %v140, 0
    %v148 = vunpack.c.l.b16 %v136
    %v149 = vunpack.c.l.b16 %v137
    %v150 = vunpack.c.l.b16 %v138
    %v151 = vunpack.c.l.b16 %v139
    %v152 = vpack.c.b16 %v149, %v148
    %v153 = vpack.c.b16 %v151, %v150
    %v157 = vsel %vm114, %v135, 0
    %159 = vmatpush.bf16.msra.mxu0 0
    %160 = vmatpush.bf16.msra.mxu0 0
    %161 = vmatpush.bf16.msra.mxu0 0
    %162 = vmatpush.bf16.msra.mxu0 0
    %163 = vmatpush.bf16.msra.mxu0 0
    %164 = vmatpush.bf16.msra.mxu0 0
    %165 = vmatpush.bf16.msra.mxu0 %v153
    %166 = vmatpush.bf16.msra.mxu0 %v152
    %167 = vmatmul.bf16.gmra.mxu0 %v157
    %v168 = vpop.f32.mrf.mxu0
    %v169 = vadd.f32 %v142, %v168
    %v170 = vpop.f32.mrf.mxu0
    %171 = vdwg.mxu0
    %vm172 = vcmask 130048
    %173 = vst.msk [vmem:[#allocation2] sm:$0xff] %vm172, %v169
    // Predicated region
    $region38: #{tpu_custom_call.1} parent=1 // pred_check
      _
    $region39: #{tpu_custom_call.1} parent=1 // pred_check_branch
      %175 = sbr.rel (0) target = $region41
    $region40: #{tpu_custom_call.1} parent=1 // pred_region
      %177 = vsyncadd [#allocation3], 0
      %s179 = sshll.u32 [#allocation2], 4
      %s180 = int_to_ptr.vmem [resolvable:$true] %s179
      %s181 = sshll.u32 %s9, 4
      %s182 = int_to_ptr.hbm [resolvable:$true] %s181
      %184 = dma.vmem_to_hbm [thread:$0]  %s180, 128, %s182, [#allocation3]
    $region41: #{tpu_custom_call.1} parent=1 // pred_fallthru
      _
    // Predicated region
    $region42: #{tpu_custom_call.1} parent=1 // pred_check
      _
    $region43: #{tpu_custom_call.1} parent=1 // pred_check_branch
      %186 = sbr.rel (0) target = $region45
    $region44: #{tpu_custom_call.1} parent=1 // pred_region
      %188 = dma.done [#allocation3], 128
    $region45: #{tpu_custom_call.1} parent=1 // pred_fallthru
      _
    %189 = vsyncpa [#allocation3], 1

</llo_original>
